<compile_context>
chip_gen: v7x
topology: tpu7x:2x2x1
jax: 0.10.0
libtpu: 0.0.40
codegen_flags: <defaults>
</compile_context>

<pallas_src>
import jax
import jax.numpy as jnp
from jax.experimental import pallas as pl
from jax.experimental.pallas import tpu as pltpu


def _make_fcb_kernel(H, W, nb):
    HW = H * W

    def kernel(x_ref, col_ref, w1_ref, w2_ref, o_ref):
        # x_ref  : VMEM (nb, Cin,  HW)   input block, lane-dense spatial axis
        # col_ref: VMEM (1, HW) int32    column index (p % W) of each position
        # w1_ref : VMEM (3*Cin,  Cout, 1) conv1 taps as (Cout,1) weight columns
        # w2_ref : VMEM (3*Cout, Cout, 1) conv2 taps as (Cout,1) weight columns
        # o_ref  : VMEM (nb, Cout, HW)   output block
        Cin = x_ref.shape[1]
        Cout = o_ref.shape[1]

        # --- edge masks, hoisted out of the per-image loop (image-invariant) ---
        col = col_ref[...]                                            # (1, HW)
        right_edge = jnp.broadcast_to(col, (Cin, HW)) == (W - 1)      # w == W-1
        left_edge = jnp.broadcast_to(col, (Cout, HW)) == 0            # w == 0
        pos = jax.lax.broadcasted_iota(jnp.int32, (Cout, HW), 1)
        top_row = pos < W                                             # h == 0
        bot_row = pos >= (HW - W)                                     # h == H-1

        def one_image(b, carry):
            xb = x_ref[b]                                             # (Cin, HW)

            # ---- pad1 (reflect right) + conv1 (1,3): all Cin planes at once --
            shl = pltpu.roll(xb, shift=1, axis=1)        # value of column w-1
            shr = pltpu.roll(xb, shift=HW - 1, axis=1)   # value of column w+1
            tap_l = shl                                  # col 0 junk; fixed below
            tap_c = xb
            tap_r = jnp.where(right_edge, shl, shr)      # right edge -> col W-2
            taps1 = (tap_l, tap_c, tap_r)

            # z[h, w] = conv1 output already shifted by pad2's left reflection:
            # z[h, w] = x1[h, w-1] for w >= 1; column 0 patched below.
            z = jnp.zeros((Cout, HW), jnp.float32)
            for kw in range(3):
                tap = taps1[kw]
                for ci in range(Cin):
                    wcol = w1_ref[kw * Cin + ci]         # (Cout, 1)
                    z = z + wcol * tap[ci:ci + 1, :]     # dense (Cout, HW) FMA
            # pad2 left reflection: column 0 must equal column 2 (= x1[:, 1]).
            z = jnp.where(left_edge, pltpu.roll(z, shift=HW - 2, axis=1), z)

            # ---- pad2 (reflect top) / pad1 bottom row + conv2 (3,1) ----------
            up = pltpu.roll(z, shift=W, axis=1)          # value of row h-1
            dn = pltpu.roll(z, shift=HW - W, axis=1)     # value of row h+1
            z_up = jnp.where(top_row, dn, up)            # top reflects to row 1
            z_dn = jnp.where(bot_row, up, dn)            # bottom reflects to H-2
            taps2 = (z_up, z, z_dn)

            acc = jnp.zeros((Cout, HW), jnp.float32)
            for kh in range(3):
                tap = taps2[kh]
                for c in range(Cout):
                    wcol = w2_ref[kh * Cout + c]         # (Cout, 1)
                    acc = acc + wcol * tap[c:c + 1, :]   # dense (Cout, HW) FMA

            o_ref[b] = jnp.maximum(acc, 0.0).astype(o_ref.dtype)  # unmasked vst
            return carry

        if nb == 1:
            one_image(0, 0)
        else:
            # fori_loop (not a Python for) so per-image live ranges stay bounded.
            jax.lax.fori_loop(0, nb, one_image, 0)

    return kernel


def _pick_batch_block(n, bytes_per_image, target_bytes=2 << 20, max_nb=32):
    """Largest divisor of n that keeps >=2 grid steps (both v7x TCs busy) while
    the block stays ~2 MiB, so double-buffered in+out blocks remain far below
    v7x's 32 MiB scoped-VMEM default (and v5e/v6e limits)."""
    best = 1
    for cand in range(1, n + 1):
        if n % cand:
            continue
        if n >= 2 and n // cand < 2:
            continue
        if cand > max_nb or cand * bytes_per_image > target_bytes:
            continue
        best = max(best, cand)
    return best


def fcb_forward(x_nchw, w1, w2):
    """Pallas FCB.forward. x_nchw: (N, Cin, H, W) -> (N, Cout, H, W)."""
    N, Cin, H, W = x_nchw.shape
    Cout = w1.shape[-1]
    assert H >= 2 and W >= 3, "reflection pads of FCB need H >= 2 and W >= 3"
    assert w1.shape == (3, Cin, Cout) and w2.shape == (3, Cout, Cout)
    HW = H * W

    pad8 = lambda c: -(-c // 8) * 8                      # sublane padding in VMEM
    bytes_per_image = (pad8(Cin) + pad8(Cout)) * HW * 4
    nb = _pick_batch_block(N, bytes_per_image)
    grid = (N // nb,)

    x_flat = x_nchw.reshape(N, Cin, HW)                          # free NCHW view
    col_ids = (jnp.arange(HW, dtype=jnp.int32) % W).reshape(1, HW)
    w1v = w1.astype(jnp.float32).reshape(3 * Cin, Cout, 1)       # [kw*Cin+ci]
    w2v = w2.astype(jnp.float32).reshape(3 * Cout, Cout, 1)      # [kh*Cout+c]

    out_flat = pl.pallas_call(
        _make_fcb_kernel(H, W, nb),
        out_shape=jax.ShapeDtypeStruct((N, Cout, HW), jnp.float32),
        grid=grid,
        in_specs=[
            pl.BlockSpec((nb, Cin, HW), lambda i: (i, 0, 0)),
            pl.BlockSpec((1, HW), lambda i: (0, 0)),
            pl.BlockSpec((3 * Cin, Cout, 1), lambda i: (0, 0, 0)),
            pl.BlockSpec((3 * Cout, Cout, 1), lambda i: (0, 0, 0)),
        ],
        out_specs=pl.BlockSpec((nb, Cout, HW), lambda i: (i, 0, 0)),
        compiler_params=pltpu.CompilerParams(dimension_semantics=("parallel",)),
    )(x_flat, col_ids, w1v, w2v)
    return out_flat.reshape(N, Cout, H, W)


def fcb_reference(x_nchw, w1, w2):
    """Pure-JAX reference matching the PyTorch module exactly."""
    xp = jnp.pad(x_nchw, ((0, 0), (0, 0), (0, 1), (0, 1)), mode="reflect")
    w1_oihw = jnp.transpose(w1, (2, 1, 0))[:, :, None, :]        # (Cout, Cin, 1, 3)
    x1 = jax.lax.conv_general_dilated(
        xp, w1_oihw, (1, 1), "VALID",
        dimension_numbers=("NCHW", "OIHW", "NCHW"))
    x1p = jnp.pad(x1, ((0, 0), (0, 0), (1, 0), (1, 0)), mode="reflect")
    w2_oihw = jnp.transpose(w2, (2, 1, 0))[:, :, :, None]        # (Cout, Cout, 3, 1)
    x2 = jax.lax.conv_general_dilated(
        x1p, w2_oihw, (1, 1), "VALID",
        dimension_numbers=("NCHW", "OIHW", "NCHW"))
    return jnp.maximum(x2, 0.0)


if __name__ == "__main__":
    N, Cin, Cout, H, W = 2, 4, 8, 16, 16

    key = jax.random.PRNGKey(0)
    kx, k1, k2 = jax.random.split(key, 3)
    x = jax.random.normal(kx, (N, Cin, H, W), jnp.float32)
    # Conv2d(..., bias=False) weights:
    #   conv1 torch weight (Cout, Cin, 1, 3)  -> stored here as w1[kw, ci, co]
    #   conv2 torch weight (Cout, Cout, 3, 1) -> stored here as w2[kh, c,  co]
    w1 = jax.random.normal(k1, (3, Cin, Cout), jnp.float32) * 0.1
    w2 = jax.random.normal(k2, (3, Cout, Cout), jnp.float32) * 0.1

    out = jax.jit(fcb_forward)(x, w1, w2)
    out = jax.block_until_ready(out)

    ref = fcb_reference(x, w1, w2)
    assert out.shape == (N, Cout, H, W)
    assert jnp.allclose(out, ref, atol=1e-4, rtol=1e-4), float(jnp.max(jnp.abs(out - ref)))
    print("KERNEL_OK")
</pallas_src>

<mosaic_0001>
module attributes {stable_mosaic.version = 11 : i64} {
  func.func @kernel(%arg0: i32, %arg1: memref<1x4x256xf32, #tpu.memory_space<vmem>>, %arg2: memref<1x256xi32, #tpu.memory_space<vmem>>, %arg3: memref<12x8x1xf32, #tpu.memory_space<vmem>>, %arg4: memref<24x8x1xf32, #tpu.memory_space<vmem>>, %arg5: memref<1x8x256xf32, #tpu.memory_space<vmem>>) attributes {dimension_semantics = [#tpu.dimension_semantics<parallel>], iteration_bounds = array<i64: 2>, scalar_prefetch = 0 : i64, scratch_operands = 0 : i64, tpu.core_type = #tpu.core_type<tc>, window_params = [{transform_indices = @transform_0, window_bounds = array<i64: 1, 4, 256>}, {pipeline_mode = #tpu.pipeline_mode<synchronous>, transform_indices = @transform_1, window_bounds = array<i64: 1, 256>}, {pipeline_mode = #tpu.pipeline_mode<synchronous>, transform_indices = @transform_2, window_bounds = array<i64: 12, 8, 1>}, {pipeline_mode = #tpu.pipeline_mode<synchronous>, transform_indices = @transform_3, window_bounds = array<i64: 24, 8, 1>}, {transform_indices = @transform_4, window_bounds = array<i64: 1, 8, 256>}]} {
    %c0 = arith.constant 0 : index
    %c0_0 = arith.constant 0 : index
    %0 = vector.load %arg2[%c0, %c0_0] : memref<1x256xi32, #tpu.memory_space<vmem>>, vector<1x256xi32>
    %1 = vector.shape_cast %0 : vector<1x256xi32> to vector<1x256xi32>
    %2 = vector.broadcast %1 : vector<1x256xi32> to vector<4x256xi32>
    %c15_i32 = arith.constant 15 : i32
    %3 = vector.broadcast %c15_i32 : i32 to vector<4x256xi32>
    %4 = arith.cmpi eq, %2, %3 : vector<4x256xi32>
    %5 = vector.shape_cast %0 : vector<1x256xi32> to vector<1x256xi32>
    %6 = vector.broadcast %5 : vector<1x256xi32> to vector<8x256xi32>
    %c0_i32 = arith.constant 0 : i32
    %7 = vector.broadcast %c0_i32 : i32 to vector<8x256xi32>
    %8 = arith.cmpi eq, %6, %7 : vector<8x256xi32>
    %9 = tpu.iota {dimensions = array<i32: 1>} : vector<8x256xi32>
    %c16_i32 = arith.constant 16 : i32
    %10 = vector.broadcast %c16_i32 : i32 to vector<8x256xi32>
    %11 = arith.cmpi slt, %9, %10 : vector<8x256xi32>
    %c240_i32 = arith.constant 240 : i32
    %12 = vector.broadcast %c240_i32 : i32 to vector<8x256xi32>
    %13 = arith.cmpi sge, %9, %12 : vector<8x256xi32>
    %c0_1 = arith.constant 0 : index
    %c0_2 = arith.constant 0 : index
    %c0_3 = arith.constant 0 : index
    %14 = vector.load %arg1[%c0_1, %c0_2, %c0_3] : memref<1x4x256xf32, #tpu.memory_space<vmem>>, vector<1x4x256xf32>
    %15 = vector.shape_cast %14 : vector<1x4x256xf32> to vector<4x256xf32>
    %c1_i32 = arith.constant 1 : i32
    %16 = tpu.dynamic_rotate %15 by %c1_i32 dim 1 : vector<4x256xf32>, i32 -> vector<4x256xf32>
    %c255_i32 = arith.constant 255 : i32
    %17 = tpu.dynamic_rotate %15 by %c255_i32 dim 1 : vector<4x256xf32>, i32 -> vector<4x256xf32>
    %18 = arith.select %4, %16, %17 : vector<4x256xi1>, vector<4x256xf32>
    %cst = arith.constant 0.000000e+00 : f32
    %19 = vector.broadcast %cst : f32 to vector<8x256xf32>
    %c0_4 = arith.constant 0 : index
    %c0_5 = arith.constant 0 : index
    %c0_6 = arith.constant 0 : index
    %20 = vector.load %arg3[%c0_4, %c0_5, %c0_6] : memref<12x8x1xf32, #tpu.memory_space<vmem>>, vector<1x8x1xf32>
    %21 = vector.shape_cast %20 : vector<1x8x1xf32> to vector<8x1xf32>
    %22 = vector.extract_strided_slice %16 {offsets = [0, 0], sizes = [1, 256], strides = [1, 1]} : vector<4x256xf32> to vector<1x256xf32>
    %23 = vector.broadcast %21 : vector<8x1xf32> to vector<8x256xf32>
    %24 = vector.broadcast %22 : vector<1x256xf32> to vector<8x256xf32>
    %25 = arith.mulf %23, %24 : vector<8x256xf32>
    %26 = arith.addf %19, %25 : vector<8x256xf32>
    %c1 = arith.constant 1 : index
    %c0_7 = arith.constant 0 : index
    %c0_8 = arith.constant 0 : index
    %27 = vector.load %arg3[%c1, %c0_7, %c0_8] : memref<12x8x1xf32, #tpu.memory_space<vmem>>, vector<1x8x1xf32>
    %28 = vector.shape_cast %27 : vector<1x8x1xf32> to vector<8x1xf32>
    %29 = vector.extract_strided_slice %16 {offsets = [1, 0], sizes = [1, 256], strides = [1, 1]} : vector<4x256xf32> to vector<1x256xf32>
    %30 = vector.broadcast %28 : vector<8x1xf32> to vector<8x256xf32>
    %31 = vector.broadcast %29 : vector<1x256xf32> to vector<8x256xf32>
    %32 = arith.mulf %30, %31 : vector<8x256xf32>
    %33 = arith.addf %26, %32 : vector<8x256xf32>
    %c2 = arith.constant 2 : index
    %c0_9 = arith.constant 0 : index
    %c0_10 = arith.constant 0 : index
    %34 = vector.load %arg3[%c2, %c0_9, %c0_10] : memref<12x8x1xf32, #tpu.memory_space<vmem>>, vector<1x8x1xf32>
    %35 = vector.shape_cast %34 : vector<1x8x1xf32> to vector<8x1xf32>
    %36 = vector.extract_strided_slice %16 {offsets = [2, 0], sizes = [1, 256], strides = [1, 1]} : vector<4x256xf32> to vector<1x256xf32>
    %37 = vector.broadcast %35 : vector<8x1xf32> to vector<8x256xf32>
    %38 = vector.broadcast %36 : vector<1x256xf32> to vector<8x256xf32>
    %39 = arith.mulf %37, %38 : vector<8x256xf32>
    %40 = arith.addf %33, %39 : vector<8x256xf32>
    %c3 = arith.constant 3 : index
    %c0_11 = arith.constant 0 : index
    %c0_12 = arith.constant 0 : index
    %41 = vector.load %arg3[%c3, %c0_11, %c0_12] : memref<12x8x1xf32, #tpu.memory_space<vmem>>, vector<1x8x1xf32>
    %42 = vector.shape_cast %41 : vector<1x8x1xf32> to vector<8x1xf32>
    %43 = vector.extract_strided_slice %16 {offsets = [3, 0], sizes = [1, 256], strides = [1, 1]} : vector<4x256xf32> to vector<1x256xf32>
    %44 = vector.broadcast %42 : vector<8x1xf32> to vector<8x256xf32>
    %45 = vector.broadcast %43 : vector<1x256xf32> to vector<8x256xf32>
    %46 = arith.mulf %44, %45 : vector<8x256xf32>
    %47 = arith.addf %40, %46 : vector<8x256xf32>
    %c4 = arith.constant 4 : index
    %c0_13 = arith.constant 0 : index
    %c0_14 = arith.constant 0 : index
    %48 = vector.load %arg3[%c4, %c0_13, %c0_14] : memref<12x8x1xf32, #tpu.memory_space<vmem>>, vector<1x8x1xf32>
    %49 = vector.shape_cast %48 : vector<1x8x1xf32> to vector<8x1xf32>
    %50 = vector.extract_strided_slice %15 {offsets = [0, 0], sizes = [1, 256], strides = [1, 1]} : vector<4x256xf32> to vector<1x256xf32>
    %51 = vector.broadcast %49 : vector<8x1xf32> to vector<8x256xf32>
    %52 = vector.broadcast %50 : vector<1x256xf32> to vector<8x256xf32>
    %53 = arith.mulf %51, %52 : vector<8x256xf32>
    %54 = arith.addf %47, %53 : vector<8x256xf32>
    %c5 = arith.constant 5 : index
    %c0_15 = arith.constant 0 : index
    %c0_16 = arith.constant 0 : index
    %55 = vector.load %arg3[%c5, %c0_15, %c0_16] : memref<12x8x1xf32, #tpu.memory_space<vmem>>, vector<1x8x1xf32>
    %56 = vector.shape_cast %55 : vector<1x8x1xf32> to vector<8x1xf32>
    %57 = vector.extract_strided_slice %15 {offsets = [1, 0], sizes = [1, 256], strides = [1, 1]} : vector<4x256xf32> to vector<1x256xf32>
    %58 = vector.broadcast %56 : vector<8x1xf32> to vector<8x256xf32>
    %59 = vector.broadcast %57 : vector<1x256xf32> to vector<8x256xf32>
    %60 = arith.mulf %58, %59 : vector<8x256xf32>
    %61 = arith.addf %54, %60 : vector<8x256xf32>
    %c6 = arith.constant 6 : index
    %c0_17 = arith.constant 0 : index
    %c0_18 = arith.constant 0 : index
    %62 = vector.load %arg3[%c6, %c0_17, %c0_18] : memref<12x8x1xf32, #tpu.memory_space<vmem>>, vector<1x8x1xf32>
    %63 = vector.shape_cast %62 : vector<1x8x1xf32> to vector<8x1xf32>
    %64 = vector.extract_strided_slice %15 {offsets = [2, 0], sizes = [1, 256], strides = [1, 1]} : vector<4x256xf32> to vector<1x256xf32>
    %65 = vector.broadcast %63 : vector<8x1xf32> to vector<8x256xf32>
    %66 = vector.broadcast %64 : vector<1x256xf32> to vector<8x256xf32>
    %67 = arith.mulf %65, %66 : vector<8x256xf32>
    %68 = arith.addf %61, %67 : vector<8x256xf32>
    %c7 = arith.constant 7 : index
    %c0_19 = arith.constant 0 : index
    %c0_20 = arith.constant 0 : index
    %69 = vector.load %arg3[%c7, %c0_19, %c0_20] : memref<12x8x1xf32, #tpu.memory_space<vmem>>, vector<1x8x1xf32>
    %70 = vector.shape_cast %69 : vector<1x8x1xf32> to vector<8x1xf32>
    %71 = vector.extract_strided_slice %15 {offsets = [3, 0], sizes = [1, 256], strides = [1, 1]} : vector<4x256xf32> to vector<1x256xf32>
    %72 = vector.broadcast %70 : vector<8x1xf32> to vector<8x256xf32>
    %73 = vector.broadcast %71 : vector<1x256xf32> to vector<8x256xf32>
    %74 = arith.mulf %72, %73 : vector<8x256xf32>
    %75 = arith.addf %68, %74 : vector<8x256xf32>
    %c8 = arith.constant 8 : index
    %c0_21 = arith.constant 0 : index
    %c0_22 = arith.constant 0 : index
    %76 = vector.load %arg3[%c8, %c0_21, %c0_22] : memref<12x8x1xf32, #tpu.memory_space<vmem>>, vector<1x8x1xf32>
    %77 = vector.shape_cast %76 : vector<1x8x1xf32> to vector<8x1xf32>
    %78 = vector.extract_strided_slice %18 {offsets = [0, 0], sizes = [1, 256], strides = [1, 1]} : vector<4x256xf32> to vector<1x256xf32>
    %79 = vector.broadcast %77 : vector<8x1xf32> to vector<8x256xf32>
    %80 = vector.broadcast %78 : vector<1x256xf32> to vector<8x256xf32>
    %81 = arith.mulf %79, %80 : vector<8x256xf32>
    %82 = arith.addf %75, %81 : vector<8x256xf32>
    %c9 = arith.constant 9 : index
    %c0_23 = arith.constant 0 : index
    %c0_24 = arith.constant 0 : index
    %83 = vector.load %arg3[%c9, %c0_23, %c0_24] : memref<12x8x1xf32, #tpu.memory_space<vmem>>, vector<1x8x1xf32>
    %84 = vector.shape_cast %83 : vector<1x8x1xf32> to vector<8x1xf32>
    %85 = vector.extract_strided_slice %18 {offsets = [1, 0], sizes = [1, 256], strides = [1, 1]} : vector<4x256xf32> to vector<1x256xf32>
    %86 = vector.broadcast %84 : vector<8x1xf32> to vector<8x256xf32>
    %87 = vector.broadcast %85 : vector<1x256xf32> to vector<8x256xf32>
    %88 = arith.mulf %86, %87 : vector<8x256xf32>
    %89 = arith.addf %82, %88 : vector<8x256xf32>
    %c10 = arith.constant 10 : index
    %c0_25 = arith.constant 0 : index
    %c0_26 = arith.constant 0 : index
    %90 = vector.load %arg3[%c10, %c0_25, %c0_26] : memref<12x8x1xf32, #tpu.memory_space<vmem>>, vector<1x8x1xf32>
    %91 = vector.shape_cast %90 : vector<1x8x1xf32> to vector<8x1xf32>
    %92 = vector.extract_strided_slice %18 {offsets = [2, 0], sizes = [1, 256], strides = [1, 1]} : vector<4x256xf32> to vector<1x256xf32>
    %93 = vector.broadcast %91 : vector<8x1xf32> to vector<8x256xf32>
    %94 = vector.broadcast %92 : vector<1x256xf32> to vector<8x256xf32>
    %95 = arith.mulf %93, %94 : vector<8x256xf32>
    %96 = arith.addf %89, %95 : vector<8x256xf32>
    %c11 = arith.constant 11 : index
    %c0_27 = arith.constant 0 : index
    %c0_28 = arith.constant 0 : index
    %97 = vector.load %arg3[%c11, %c0_27, %c0_28] : memref<12x8x1xf32, #tpu.memory_space<vmem>>, vector<1x8x1xf32>
    %98 = vector.shape_cast %97 : vector<1x8x1xf32> to vector<8x1xf32>
    %99 = vector.extract_strided_slice %18 {offsets = [3, 0], sizes = [1, 256], strides = [1, 1]} : vector<4x256xf32> to vector<1x256xf32>
    %100 = vector.broadcast %98 : vector<8x1xf32> to vector<8x256xf32>
    %101 = vector.broadcast %99 : vector<1x256xf32> to vector<8x256xf32>
    %102 = arith.mulf %100, %101 : vector<8x256xf32>
    %103 = arith.addf %96, %102 : vector<8x256xf32>
    %c254_i32 = arith.constant 254 : i32
    %104 = tpu.dynamic_rotate %103 by %c254_i32 dim 1 : vector<8x256xf32>, i32 -> vector<8x256xf32>
    %105 = arith.select %8, %104, %103 : vector<8x256xi1>, vector<8x256xf32>
    %c16_i32_29 = arith.constant 16 : i32
    %106 = tpu.dynamic_rotate %105 by %c16_i32_29 dim 1 : vector<8x256xf32>, i32 -> vector<8x256xf32>
    %c240_i32_30 = arith.constant 240 : i32
    %107 = tpu.dynamic_rotate %105 by %c240_i32_30 dim 1 : vector<8x256xf32>, i32 -> vector<8x256xf32>
    %108 = arith.select %11, %107, %106 : vector<8x256xi1>, vector<8x256xf32>
    %109 = arith.select %13, %106, %107 : vector<8x256xi1>, vector<8x256xf32>
    %cst_31 = arith.constant 0.000000e+00 : f32
    %110 = vector.broadcast %cst_31 : f32 to vector<8x256xf32>
    %c0_32 = arith.constant 0 : index
    %c0_33 = arith.constant 0 : index
    %c0_34 = arith.constant 0 : index
    %111 = vector.load %arg4[%c0_32, %c0_33, %c0_34] : memref<24x8x1xf32, #tpu.memory_space<vmem>>, vector<1x8x1xf32>
    %112 = vector.shape_cast %111 : vector<1x8x1xf32> to vector<8x1xf32>
    %113 = vector.extract_strided_slice %108 {offsets = [0, 0], sizes = [1, 256], strides = [1, 1]} : vector<8x256xf32> to vector<1x256xf32>
    %114 = vector.broadcast %112 : vector<8x1xf32> to vector<8x256xf32>
    %115 = vector.broadcast %113 : vector<1x256xf32> to vector<8x256xf32>
    %116 = arith.mulf %114, %115 : vector<8x256xf32>
    %117 = arith.addf %110, %116 : vector<8x256xf32>
    %c1_35 = arith.constant 1 : index
    %c0_36 = arith.constant 0 : index
    %c0_37 = arith.constant 0 : index
    %118 = vector.load %arg4[%c1_35, %c0_36, %c0_37] : memref<24x8x1xf32, #tpu.memory_space<vmem>>, vector<1x8x1xf32>
    %119 = vector.shape_cast %118 : vector<1x8x1xf32> to vector<8x1xf32>
    %120 = vector.extract_strided_slice %108 {offsets = [1, 0], sizes = [1, 256], strides = [1, 1]} : vector<8x256xf32> to vector<1x256xf32>
    %121 = vector.broadcast %119 : vector<8x1xf32> to vector<8x256xf32>
    %122 = vector.broadcast %120 : vector<1x256xf32> to vector<8x256xf32>
    %123 = arith.mulf %121, %122 : vector<8x256xf32>
    %124 = arith.addf %117, %123 : vector<8x256xf32>
    %c2_38 = arith.constant 2 : index
    %c0_39 = arith.constant 0 : index
    %c0_40 = arith.constant 0 : index
    %125 = vector.load %arg4[%c2_38, %c0_39, %c0_40] : memref<24x8x1xf32, #tpu.memory_space<vmem>>, vector<1x8x1xf32>
    %126 = vector.shape_cast %125 : vector<1x8x1xf32> to vector<8x1xf32>
    %127 = vector.extract_strided_slice %108 {offsets = [2, 0], sizes = [1, 256], strides = [1, 1]} : vector<8x256xf32> to vector<1x256xf32>
    %128 = vector.broadcast %126 : vector<8x1xf32> to vector<8x256xf32>
    %129 = vector.broadcast %127 : vector<1x256xf32> to vector<8x256xf32>
    %130 = arith.mulf %128, %129 : vector<8x256xf32>
    %131 = arith.addf %124, %130 : vector<8x256xf32>
    %c3_41 = arith.constant 3 : index
    %c0_42 = arith.constant 0 : index
    %c0_43 = arith.constant 0 : index
    %132 = vector.load %arg4[%c3_41, %c0_42, %c0_43] : memref<24x8x1xf32, #tpu.memory_space<vmem>>, vector<1x8x1xf32>
    %133 = vector.shape_cast %132 : vector<1x8x1xf32> to vector<8x1xf32>
    %134 = vector.extract_strided_slice %108 {offsets = [3, 0], sizes = [1, 256], strides = [1, 1]} : vector<8x256xf32> to vector<1x256xf32>
    %135 = vector.broadcast %133 : vector<8x1xf32> to vector<8x256xf32>
    %136 = vector.broadcast %134 : vector<1x256xf32> to vector<8x256xf32>
    %137 = arith.mulf %135, %136 : vector<8x256xf32>
    %138 = arith.addf %131, %137 : vector<8x256xf32>
    %c4_44 = arith.constant 4 : index
    %c0_45 = arith.constant 0 : index
    %c0_46 = arith.constant 0 : index
    %139 = vector.load %arg4[%c4_44, %c0_45, %c0_46] : memref<24x8x1xf32, #tpu.memory_space<vmem>>, vector<1x8x1xf32>
    %140 = vector.shape_cast %139 : vector<1x8x1xf32> to vector<8x1xf32>
    %141 = vector.extract_strided_slice %108 {offsets = [4, 0], sizes = [1, 256], strides = [1, 1]} : vector<8x256xf32> to vector<1x256xf32>
    %142 = vector.broadcast %140 : vector<8x1xf32> to vector<8x256xf32>
    %143 = vector.broadcast %141 : vector<1x256xf32> to vector<8x256xf32>
    %144 = arith.mulf %142, %143 : vector<8x256xf32>
    %145 = arith.addf %138, %144 : vector<8x256xf32>
    %c5_47 = arith.constant 5 : index
    %c0_48 = arith.constant 0 : index
    %c0_49 = arith.constant 0 : index
    %146 = vector.load %arg4[%c5_47, %c0_48, %c0_49] : memref<24x8x1xf32, #tpu.memory_space<vmem>>, vector<1x8x1xf32>
    %147 = vector.shape_cast %146 : vector<1x8x1xf32> to vector<8x1xf32>
    %148 = vector.extract_strided_slice %108 {offsets = [5, 0], sizes = [1, 256], strides = [1, 1]} : vector<8x256xf32> to vector<1x256xf32>
    %149 = vector.broadcast %147 : vector<8x1xf32> to vector<8x256xf32>
    %150 = vector.broadcast %148 : vector<1x256xf32> to vector<8x256xf32>
    %151 = arith.mulf %149, %150 : vector<8x256xf32>
    %152 = arith.addf %145, %151 : vector<8x256xf32>
    %c6_50 = arith.constant 6 : index
    %c0_51 = arith.constant 0 : index
    %c0_52 = arith.constant 0 : index
    %153 = vector.load %arg4[%c6_50, %c0_51, %c0_52] : memref<24x8x1xf32, #tpu.memory_space<vmem>>, vector<1x8x1xf32>
    %154 = vector.shape_cast %153 : vector<1x8x1xf32> to vector<8x1xf32>
    %155 = vector.extract_strided_slice %108 {offsets = [6, 0], sizes = [1, 256], strides = [1, 1]} : vector<8x256xf32> to vector<1x256xf32>
    %156 = vector.broadcast %154 : vector<8x1xf32> to vector<8x256xf32>
    %157 = vector.broadcast %155 : vector<1x256xf32> to vector<8x256xf32>
    %158 = arith.mulf %156, %157 : vector<8x256xf32>
    %159 = arith.addf %152, %158 : vector<8x256xf32>
    %c7_53 = arith.constant 7 : index
    %c0_54 = arith.constant 0 : index
    %c0_55 = arith.constant 0 : index
    %160 = vector.load %arg4[%c7_53, %c0_54, %c0_55] : memref<24x8x1xf32, #tpu.memory_space<vmem>>, vector<1x8x1xf32>
    %161 = vector.shape_cast %160 : vector<1x8x1xf32> to vector<8x1xf32>
    %162 = vector.extract_strided_slice %108 {offsets = [7, 0], sizes = [1, 256], strides = [1, 1]} : vector<8x256xf32> to vector<1x256xf32>
    %163 = vector.broadcast %161 : vector<8x1xf32> to vector<8x256xf32>
    %164 = vector.broadcast %162 : vector<1x256xf32> to vector<8x256xf32>
    %165 = arith.mulf %163, %164 : vector<8x256xf32>
    %166 = arith.addf %159, %165 : vector<8x256xf32>
    %c8_56 = arith.constant 8 : index
    %c0_57 = arith.constant 0 : index
    %c0_58 = arith.constant 0 : index
    %167 = vector.load %arg4[%c8_56, %c0_57, %c0_58] : memref<24x8x1xf32, #tpu.memory_space<vmem>>, vector<1x8x1xf32>
    %168 = vector.shape_cast %167 : vector<1x8x1xf32> to vector<8x1xf32>
    %169 = vector.extract_strided_slice %105 {offsets = [0, 0], sizes = [1, 256], strides = [1, 1]} : vector<8x256xf32> to vector<1x256xf32>
    %170 = vector.broadcast %168 : vector<8x1xf32> to vector<8x256xf32>
    %171 = vector.broadcast %169 : vector<1x256xf32> to vector<8x256xf32>
    %172 = arith.mulf %170, %171 : vector<8x256xf32>
    %173 = arith.addf %166, %172 : vector<8x256xf32>
    %c9_59 = arith.constant 9 : index
    %c0_60 = arith.constant 0 : index
    %c0_61 = arith.constant 0 : index
    %174 = vector.load %arg4[%c9_59, %c0_60, %c0_61] : memref<24x8x1xf32, #tpu.memory_space<vmem>>, vector<1x8x1xf32>
    %175 = vector.shape_cast %174 : vector<1x8x1xf32> to vector<8x1xf32>
    %176 = vector.extract_strided_slice %105 {offsets = [1, 0], sizes = [1, 256], strides = [1, 1]} : vector<8x256xf32> to vector<1x256xf32>
    %177 = vector.broadcast %175 : vector<8x1xf32> to vector<8x256xf32>
    %178 = vector.broadcast %176 : vector<1x256xf32> to vector<8x256xf32>
    %179 = arith.mulf %177, %178 : vector<8x256xf32>
    %180 = arith.addf %173, %179 : vector<8x256xf32>
    %c10_62 = arith.constant 10 : index
    %c0_63 = arith.constant 0 : index
    %c0_64 = arith.constant 0 : index
    %181 = vector.load %arg4[%c10_62, %c0_63, %c0_64] : memref<24x8x1xf32, #tpu.memory_space<vmem>>, vector<1x8x1xf32>
    %182 = vector.shape_cast %181 : vector<1x8x1xf32> to vector<8x1xf32>
    %183 = vector.extract_strided_slice %105 {offsets = [2, 0], sizes = [1, 256], strides = [1, 1]} : vector<8x256xf32> to vector<1x256xf32>
    %184 = vector.broadcast %182 : vector<8x1xf32> to vector<8x256xf32>
    %185 = vector.broadcast %183 : vector<1x256xf32> to vector<8x256xf32>
    %186 = arith.mulf %184, %185 : vector<8x256xf32>
    %187 = arith.addf %180, %186 : vector<8x256xf32>
    %c11_65 = arith.constant 11 : index
    %c0_66 = arith.constant 0 : index
    %c0_67 = arith.constant 0 : index
    %188 = vector.load %arg4[%c11_65, %c0_66, %c0_67] : memref<24x8x1xf32, #tpu.memory_space<vmem>>, vector<1x8x1xf32>
    %189 = vector.shape_cast %188 : vector<1x8x1xf32> to vector<8x1xf32>
    %190 = vector.extract_strided_slice %105 {offsets = [3, 0], sizes = [1, 256], strides = [1, 1]} : vector<8x256xf32> to vector<1x256xf32>
    %191 = vector.broadcast %189 : vector<8x1xf32> to vector<8x256xf32>
    %192 = vector.broadcast %190 : vector<1x256xf32> to vector<8x256xf32>
    %193 = arith.mulf %191, %192 : vector<8x256xf32>
    %194 = arith.addf %187, %193 : vector<8x256xf32>
    %c12 = arith.constant 12 : index
    %c0_68 = arith.constant 0 : index
    %c0_69 = arith.constant 0 : index
    %195 = vector.load %arg4[%c12, %c0_68, %c0_69] : memref<24x8x1xf32, #tpu.memory_space<vmem>>, vector<1x8x1xf32>
    %196 = vector.shape_cast %195 : vector<1x8x1xf32> to vector<8x1xf32>
    %197 = vector.extract_strided_slice %105 {offsets = [4, 0], sizes = [1, 256], strides = [1, 1]} : vector<8x256xf32> to vector<1x256xf32>
    %198 = vector.broadcast %196 : vector<8x1xf32> to vector<8x256xf32>
    %199 = vector.broadcast %197 : vector<1x256xf32> to vector<8x256xf32>
    %200 = arith.mulf %198, %199 : vector<8x256xf32>
    %201 = arith.addf %194, %200 : vector<8x256xf32>
    %c13 = arith.constant 13 : index
    %c0_70 = arith.constant 0 : index
    %c0_71 = arith.constant 0 : index
    %202 = vector.load %arg4[%c13, %c0_70, %c0_71] : memref<24x8x1xf32, #tpu.memory_space<vmem>>, vector<1x8x1xf32>
    %203 = vector.shape_cast %202 : vector<1x8x1xf32> to vector<8x1xf32>
    %204 = vector.extract_strided_slice %105 {offsets = [5, 0], sizes = [1, 256], strides = [1, 1]} : vector<8x256xf32> to vector<1x256xf32>
    %205 = vector.broadcast %203 : vector<8x1xf32> to vector<8x256xf32>
    %206 = vector.broadcast %204 : vector<1x256xf32> to vector<8x256xf32>
    %207 = arith.mulf %205, %206 : vector<8x256xf32>
    %208 = arith.addf %201, %207 : vector<8x256xf32>
    %c14 = arith.constant 14 : index
    %c0_72 = arith.constant 0 : index
    %c0_73 = arith.constant 0 : index
    %209 = vector.load %arg4[%c14, %c0_72, %c0_73] : memref<24x8x1xf32, #tpu.memory_space<vmem>>, vector<1x8x1xf32>
    %210 = vector.shape_cast %209 : vector<1x8x1xf32> to vector<8x1xf32>
    %211 = vector.extract_strided_slice %105 {offsets = [6, 0], sizes = [1, 256], strides = [1, 1]} : vector<8x256xf32> to vector<1x256xf32>
    %212 = vector.broadcast %210 : vector<8x1xf32> to vector<8x256xf32>
    %213 = vector.broadcast %211 : vector<1x256xf32> to vector<8x256xf32>
    %214 = arith.mulf %212, %213 : vector<8x256xf32>
    %215 = arith.addf %208, %214 : vector<8x256xf32>
    %c15 = arith.constant 15 : index
    %c0_74 = arith.constant 0 : index
    %c0_75 = arith.constant 0 : index
    %216 = vector.load %arg4[%c15, %c0_74, %c0_75] : memref<24x8x1xf32, #tpu.memory_space<vmem>>, vector<1x8x1xf32>
    %217 = vector.shape_cast %216 : vector<1x8x1xf32> to vector<8x1xf32>
    %218 = vector.extract_strided_slice %105 {offsets = [7, 0], sizes = [1, 256], strides = [1, 1]} : vector<8x256xf32> to vector<1x256xf32>
    %219 = vector.broadcast %217 : vector<8x1xf32> to vector<8x256xf32>
    %220 = vector.broadcast %218 : vector<1x256xf32> to vector<8x256xf32>
    %221 = arith.mulf %219, %220 : vector<8x256xf32>
    %222 = arith.addf %215, %221 : vector<8x256xf32>
    %c16 = arith.constant 16 : index
    %c0_76 = arith.constant 0 : index
    %c0_77 = arith.constant 0 : index
    %223 = vector.load %arg4[%c16, %c0_76, %c0_77] : memref<24x8x1xf32, #tpu.memory_space<vmem>>, vector<1x8x1xf32>
    %224 = vector.shape_cast %223 : vector<1x8x1xf32> to vector<8x1xf32>
    %225 = vector.extract_strided_slice %109 {offsets = [0, 0], sizes = [1, 256], strides = [1, 1]} : vector<8x256xf32> to vector<1x256xf32>
    %226 = vector.broadcast %224 : vector<8x1xf32> to vector<8x256xf32>
    %227 = vector.broadcast %225 : vector<1x256xf32> to vector<8x256xf32>
    %228 = arith.mulf %226, %227 : vector<8x256xf32>
    %229 = arith.addf %222, %228 : vector<8x256xf32>
    %c17 = arith.constant 17 : index
    %c0_78 = arith.constant 0 : index
    %c0_79 = arith.constant 0 : index
    %230 = vector.load %arg4[%c17, %c0_78, %c0_79] : memref<24x8x1xf32, #tpu.memory_space<vmem>>, vector<1x8x1xf32>
    %231 = vector.shape_cast %230 : vector<1x8x1xf32> to vector<8x1xf32>
    %232 = vector.extract_strided_slice %109 {offsets = [1, 0], sizes = [1, 256], strides = [1, 1]} : vector<8x256xf32> to vector<1x256xf32>
    %233 = vector.broadcast %231 : vector<8x1xf32> to vector<8x256xf32>
    %234 = vector.broadcast %232 : vector<1x256xf32> to vector<8x256xf32>
    %235 = arith.mulf %233, %234 : vector<8x256xf32>
    %236 = arith.addf %229, %235 : vector<8x256xf32>
    %c18 = arith.constant 18 : index
    %c0_80 = arith.constant 0 : index
    %c0_81 = arith.constant 0 : index
    %237 = vector.load %arg4[%c18, %c0_80, %c0_81] : memref<24x8x1xf32, #tpu.memory_space<vmem>>, vector<1x8x1xf32>
    %238 = vector.shape_cast %237 : vector<1x8x1xf32> to vector<8x1xf32>
    %239 = vector.extract_strided_slice %109 {offsets = [2, 0], sizes = [1, 256], strides = [1, 1]} : vector<8x256xf32> to vector<1x256xf32>
    %240 = vector.broadcast %238 : vector<8x1xf32> to vector<8x256xf32>
    %241 = vector.broadcast %239 : vector<1x256xf32> to vector<8x256xf32>
    %242 = arith.mulf %240, %241 : vector<8x256xf32>
    %243 = arith.addf %236, %242 : vector<8x256xf32>
    %c19 = arith.constant 19 : index
    %c0_82 = arith.constant 0 : index
    %c0_83 = arith.constant 0 : index
    %244 = vector.load %arg4[%c19, %c0_82, %c0_83] : memref<24x8x1xf32, #tpu.memory_space<vmem>>, vector<1x8x1xf32>
    %245 = vector.shape_cast %244 : vector<1x8x1xf32> to vector<8x1xf32>
    %246 = vector.extract_strided_slice %109 {offsets = [3, 0], sizes = [1, 256], strides = [1, 1]} : vector<8x256xf32> to vector<1x256xf32>
    %247 = vector.broadcast %245 : vector<8x1xf32> to vector<8x256xf32>
    %248 = vector.broadcast %246 : vector<1x256xf32> to vector<8x256xf32>
    %249 = arith.mulf %247, %248 : vector<8x256xf32>
    %250 = arith.addf %243, %249 : vector<8x256xf32>
    %c20 = arith.constant 20 : index
    %c0_84 = arith.constant 0 : index
    %c0_85 = arith.constant 0 : index
    %251 = vector.load %arg4[%c20, %c0_84, %c0_85] : memref<24x8x1xf32, #tpu.memory_space<vmem>>, vector<1x8x1xf32>
    %252 = vector.shape_cast %251 : vector<1x8x1xf32> to vector<8x1xf32>
    %253 = vector.extract_strided_slice %109 {offsets = [4, 0], sizes = [1, 256], strides = [1, 1]} : vector<8x256xf32> to vector<1x256xf32>
    %254 = vector.broadcast %252 : vector<8x1xf32> to vector<8x256xf32>
    %255 = vector.broadcast %253 : vector<1x256xf32> to vector<8x256xf32>
    %256 = arith.mulf %254, %255 : vector<8x256xf32>
    %257 = arith.addf %250, %256 : vector<8x256xf32>
    %c21 = arith.constant 21 : index
    %c0_86 = arith.constant 0 : index
    %c0_87 = arith.constant 0 : index
    %258 = vector.load %arg4[%c21, %c0_86, %c0_87] : memref<24x8x1xf32, #tpu.memory_space<vmem>>, vector<1x8x1xf32>
    %259 = vector.shape_cast %258 : vector<1x8x1xf32> to vector<8x1xf32>
    %260 = vector.extract_strided_slice %109 {offsets = [5, 0], sizes = [1, 256], strides = [1, 1]} : vector<8x256xf32> to vector<1x256xf32>
    %261 = vector.broadcast %259 : vector<8x1xf32> to vector<8x256xf32>
    %262 = vector.broadcast %260 : vector<1x256xf32> to vector<8x256xf32>
    %263 = arith.mulf %261, %262 : vector<8x256xf32>
    %264 = arith.addf %257, %263 : vector<8x256xf32>
    %c22 = arith.constant 22 : index
    %c0_88 = arith.constant 0 : index
    %c0_89 = arith.constant 0 : index
    %265 = vector.load %arg4[%c22, %c0_88, %c0_89] : memref<24x8x1xf32, #tpu.memory_space<vmem>>, vector<1x8x1xf32>
    %266 = vector.shape_cast %265 : vector<1x8x1xf32> to vector<8x1xf32>
    %267 = vector.extract_strided_slice %109 {offsets = [6, 0], sizes = [1, 256], strides = [1, 1]} : vector<8x256xf32> to vector<1x256xf32>
    %268 = vector.broadcast %266 : vector<8x1xf32> to vector<8x256xf32>
    %269 = vector.broadcast %267 : vector<1x256xf32> to vector<8x256xf32>
    %270 = arith.mulf %268, %269 : vector<8x256xf32>
    %271 = arith.addf %264, %270 : vector<8x256xf32>
    %c23 = arith.constant 23 : index
    %c0_90 = arith.constant 0 : index
    %c0_91 = arith.constant 0 : index
    %272 = vector.load %arg4[%c23, %c0_90, %c0_91] : memref<24x8x1xf32, #tpu.memory_space<vmem>>, vector<1x8x1xf32>
    %273 = vector.shape_cast %272 : vector<1x8x1xf32> to vector<8x1xf32>
    %274 = vector.extract_strided_slice %109 {offsets = [7, 0], sizes = [1, 256], strides = [1, 1]} : vector<8x256xf32> to vector<1x256xf32>
    %275 = vector.broadcast %273 : vector<8x1xf32> to vector<8x256xf32>
    %276 = vector.broadcast %274 : vector<1x256xf32> to vector<8x256xf32>
    %277 = arith.mulf %275, %276 : vector<8x256xf32>
    %278 = arith.addf %271, %277 : vector<8x256xf32>
    %cst_92 = arith.constant 0.000000e+00 : f32
    %279 = vector.broadcast %cst_92 : f32 to vector<8x256xf32>
    %280 = arith.maximumf %278, %279 : vector<8x256xf32>
    %c0_93 = arith.constant 0 : index
    %c0_94 = arith.constant 0 : index
    %c0_95 = arith.constant 0 : index
    %281 = vector.load %arg5[%c0_93, %c0_94, %c0_95] : memref<1x8x256xf32, #tpu.memory_space<vmem>>, vector<1x8x256xf32>
    %282 = vector.shape_cast %281 : vector<1x8x256xf32> to vector<8x256xf32>
    %283 = vector.shape_cast %280 : vector<8x256xf32> to vector<1x8x256xf32>
    tpu.vector_store %arg5[%c0_93, %c0_94, %c0_95], %283 {strides = array<i32>} : memref<1x8x256xf32, #tpu.memory_space<vmem>>, vector<1x8x256xf32>,
    return
  }
  func.func @transform_0(%arg0: i32) -> (i32, i32, i32) {
    %c0_i32 = arith.constant 0 : i32
    %c0_i32_0 = arith.constant 0 : i32
    %c0_i32_1 = arith.constant 0 : i32
    return %arg0, %c0_i32, %c0_i32_0 : i32, i32, i32
  }
  func.func @transform_1(%arg0: i32) -> (i32, i32) {
    %c0_i32 = arith.constant 0 : i32
    %c0_i32_0 = arith.constant 0 : i32
    %c0_i32_1 = arith.constant 0 : i32
    return %c0_i32, %c0_i32_0 : i32, i32
  }
  func.func @transform_2(%arg0: i32) -> (i32, i32, i32) {
    %c0_i32 = arith.constant 0 : i32
    %c0_i32_0 = arith.constant 0 : i32
    %c0_i32_1 = arith.constant 0 : i32
    %c0_i32_2 = arith.constant 0 : i32
    return %c0_i32, %c0_i32_0, %c0_i32_1 : i32, i32, i32
  }
  func.func @transform_3(%arg0: i32) -> (i32, i32, i32) {
    %c0_i32 = arith.constant 0 : i32
    %c0_i32_0 = arith.constant 0 : i32
    %c0_i32_1 = arith.constant 0 : i32
    %c0_i32_2 = arith.constant 0 : i32
    return %c0_i32, %c0_i32_0, %c0_i32_1 : i32, i32, i32
  }
  func.func @transform_4(%arg0: i32) -> (i32, i32, i32) {
    %c0_i32 = arith.constant 0 : i32
    %c0_i32_0 = arith.constant 0 : i32
    %c0_i32_1 = arith.constant 0 : i32
    return %arg0, %c0_i32, %c0_i32_0 : i32, i32, i32
  }
}

</mosaic_0001>

<llo_original>
// kernel: fcb_forward.1
$region0: #{fcb_forward.1}
  #allocation0 [shape = 'u32[]', space=smem, size = 0x4, offset = 0x4, fixed_abs, tag = 'smem constant byte address 0x4 - core index']
  #allocation1 [shape = 'u32[144,128]{1,0:T(1,128)}', space=vmem, size = 0x12000, scoped, tag = 'internal scratch']
  %s0 = inlined_call_operand.vmem [shape: f32[2,4,256], index: 0, kind: input, shape index: {}]
  %s1 = inlined_call_operand.vmem [shape: s32[1,256], index: 1, kind: input, shape index: {}]
  %s2 = inlined_call_operand.vmem [shape: f32[12,8,1], index: 2, kind: input, shape index: {}]
  %s3 = inlined_call_operand.vmem [shape: f32[24,8,1], index: 3, kind: input, shape index: {}]
  %s4 = inlined_call_operand.vmem [shape: f32[2,8,256], index: 4, kind: output, shape index: {}]
  %s5 = sld [smem:[#allocation0]]
  $region49: #{fcb_forward.1} parent=0
    _
  %s7 = ssub.s32 1, %s5
  %s8 = scalar_select 0, %s7, %s5
  loop: start=0, step=1, limit=4
  $region2: #{fcb_forward.1} parent=0 // loop_pre_header
    _
  $region3: #{fcb_forward.1} parent=0 // loop_header
    %s10 = sphi 0, %s14
    %p11 = scmp.ge.s32.totalorder %s10, 4
    %s20 = sphi 0, %s22
    %s23 = sphi 0, %s20
    %s24 = sphi 0, %s23
    %s40 = sphi 0, %s24
    %s44 = sphi 0, %s44
    %s46 = sphi 0, %s44
    %s47 = sphi 0, %s46
    %s61 = sphi 0, %s47
    %s65 = sphi 0, %s65
    %s67 = sphi 0, %s65
    %s68 = sphi 0, %s67
    %s82 = sphi 0, %s68
    %s86 = sphi 0, %s86
    %s88 = sphi 0, %s86
    %s89 = sphi 0, %s88
    %s103 = sphi 0, %s89
    %s109 = sphi 0, %s111
    %s112 = sphi 0, %s109
    %s113 = sphi 0, %s112
    %s129 = sphi 0, %s113
  $region4: #{fcb_forward.1} parent=0 // loop_header_branch
    %13 = sbr.rel (%p11) target = $region8
  $region5: #{fcb_forward.1} parent=0 // loop_body
    %s15 = ssub.s32 %s10, 1
    %s16 = ssub.s32 %s10, 2
    %s17 = sadd.s32 %s10, 1
    %s18 = ssub.s32 %s10, %s17
    %p19 = scmp.eq.s32.totalorder %s18, 0
    %s21 = sadd.s32 %s20, 1
    %s22 = scalar_select %p19, %s20, %s21
    %p25 = pneg %p19
    %p26 = scmp.eq.s32.totalorder %s10, 1
    %p27 = por %p25, %p26
    %p28 = scmp.ne.s32.totalorder %s20, %s23
    %p29 = scmp.eq.s32.totalorder %s10, 0
    %p30 = por %p28, %p29
    %p31 = scmp.ne.s32.totalorder %s20, %s23
    %p32 = scmp.eq.s32.totalorder %s15, 1
    %p33 = por %p31, %p32
    %p34 = scmp.ne.s32.totalorder %s23, %s24
    %p35 = scmp.eq.s32.totalorder %s15, 0
    %p36 = por %p34, %p35
    %p37 = scmp.ne.s32.totalorder %s23, %s24
    %p38 = scmp.eq.s32.totalorder %s16, 1
    %p39 = por %p37, %p38
    %p41 = scmp.ne.s32.totalorder %s24, %s40
    %p42 = scmp.eq.s32.totalorder %s16, 0
    %p43 = por %p41, %p42
    %s45 = sadd.s32 %s44, 1
    %p48 = scmp.eq.s32.totalorder %s10, 1
    %p49 = scmp.ne.s32.totalorder %s44, %s46
    %p50 = scmp.eq.s32.totalorder %s10, 0
    %p51 = por %p49, %p50
    %p52 = scmp.ne.s32.totalorder %s44, %s46
    %p53 = scmp.eq.s32.totalorder %s15, 1
    %p54 = por %p52, %p53
    %p55 = scmp.ne.s32.totalorder %s46, %s47
    %p56 = scmp.eq.s32.totalorder %s15, 0
    %p57 = por %p55, %p56
    %p58 = scmp.ne.s32.totalorder %s46, %s47
    %p59 = scmp.eq.s32.totalorder %s16, 1
    %p60 = por %p58, %p59
    %p62 = scmp.ne.s32.totalorder %s47, %s61
    %p63 = scmp.eq.s32.totalorder %s16, 0
    %p64 = por %p62, %p63
    %s66 = sadd.s32 %s65, 1
    %p69 = scmp.eq.s32.totalorder %s10, 1
    %p70 = scmp.ne.s32.totalorder %s65, %s67
    %p71 = scmp.eq.s32.totalorder %s10, 0
    %p72 = por %p70, %p71
    %p73 = scmp.ne.s32.totalorder %s65, %s67
    %p74 = scmp.eq.s32.totalorder %s15, 1
    %p75 = por %p73, %p74
    %p76 = scmp.ne.s32.totalorder %s67, %s68
    %p77 = scmp.eq.s32.totalorder %s15, 0
    %p78 = por %p76, %p77
    %p79 = scmp.ne.s32.totalorder %s67, %s68
    %p80 = scmp.eq.s32.totalorder %s16, 1
    %p81 = por %p79, %p80
    %p83 = scmp.ne.s32.totalorder %s68, %s82
    %p84 = scmp.eq.s32.totalorder %s16, 0
    %p85 = por %p83, %p84
    %s87 = sadd.s32 %s86, 1
    %p90 = scmp.eq.s32.totalorder %s10, 1
    %p91 = scmp.ne.s32.totalorder %s86, %s88
    %p92 = scmp.eq.s32.totalorder %s10, 0
    %p93 = por %p91, %p92
    %p94 = scmp.ne.s32.totalorder %s86, %s88
    %p95 = scmp.eq.s32.totalorder %s15, 1
    %p96 = por %p94, %p95
    %p97 = scmp.ne.s32.totalorder %s88, %s89
    %p98 = scmp.eq.s32.totalorder %s15, 0
    %p99 = por %p97, %p98
    %p100 = scmp.ne.s32.totalorder %s88, %s89
    %p101 = scmp.eq.s32.totalorder %s16, 1
    %p102 = por %p100, %p101
    %p104 = scmp.ne.s32.totalorder %s89, %s103
    %p105 = scmp.eq.s32.totalorder %s16, 0
    %p106 = por %p104, %p105
    %s107 = ssub.s32 %s10, %s17
    %p108 = scmp.eq.s32.totalorder %s107, 0
    %s110 = sadd.s32 %s109, 1
    %s111 = scalar_select %p108, %s109, %s110
    %p114 = pneg %p108
    %p115 = scmp.eq.s32.totalorder %s10, 1
    %p116 = por %p114, %p115
    %p117 = scmp.ne.s32.totalorder %s109, %s112
    %p118 = scmp.eq.s32.totalorder %s10, 0
    %p119 = por %p117, %p118
    %p120 = scmp.ne.s32.totalorder %s109, %s112
    %p121 = scmp.eq.s32.totalorder %s15, 1
    %p122 = por %p120, %p121
    %p123 = scmp.ne.s32.totalorder %s112, %s113
    %p124 = scmp.eq.s32.totalorder %s15, 0
    %p125 = por %p123, %p124
    %p126 = scmp.ne.s32.totalorder %s112, %s113
    %p127 = scmp.eq.s32.totalorder %s16, 1
    %p128 = por %p126, %p127
    %p130 = scmp.ne.s32.totalorder %s113, %s129
    %p131 = scmp.eq.s32.totalorder %s16, 0
    %p132 = por %p130, %p131
    %p133 = scmp.le.s32.totalorder 1, %s10
    %p134 = scmp.lt.s32.totalorder %s10, 3
    %p135 = pnand %p133, %p134
    %p136 = pneg %p135
    // Predicated region
    $region9: #{fcb_forward.1} parent=5 // pred_check
      _
    $region10: #{fcb_forward.1} parent=5 // pred_check_branch
      %138 = sbr.rel (%p135) target = $region12
    $region11: #{fcb_forward.1} parent=5 // pred_region
      %s139 = ssub.s32 %s10, 1
      // Predicated region
      $region13: #{fcb_forward.1} parent=11 // pred_check
        %p140 = pneg %p57
      $region14: #{fcb_forward.1} parent=11 // pred_check_branch
        %142 = sbr.rel (%p140) target = $region16
      $region15: #{fcb_forward.1} parent=11 // pred_region
        _
      $region16: #{fcb_forward.1} parent=11 // pred_fallthru
        _
      // Predicated region
      $region17: #{fcb_forward.1} parent=11 // pred_check
        %p143 = pneg %p78
      $region18: #{fcb_forward.1} parent=11 // pred_check_branch
        %145 = sbr.rel (%p143) target = $region20
      $region19: #{fcb_forward.1} parent=11 // pred_region
        _
      $region20: #{fcb_forward.1} parent=11 // pred_fallthru
        _
      // Predicated region
      $region21: #{fcb_forward.1} parent=11 // pred_check
        %p146 = pneg %p99
      $region22: #{fcb_forward.1} parent=11 // pred_check_branch
        %148 = sbr.rel (%p146) target = $region24
      $region23: #{fcb_forward.1} parent=11 // pred_region
        _
      $region24: #{fcb_forward.1} parent=11 // pred_fallthru
        _
    $region12: #{fcb_forward.1} parent=5 // pred_fallthru
      _
    %p149 = scmp.lt.s32.totalorder %s10, 2
    // Predicated region
    $region25: #{fcb_forward.1} parent=5 // pred_check
      %p150 = pneg %p149
    $region26: #{fcb_forward.1} parent=5 // pred_check_branch
      %152 = sbr.rel (%p150) target = $region28
    $region27: #{fcb_forward.1} parent=5 // pred_region
      // Predicated region
      $region29: #{fcb_forward.1} parent=27 // pred_check
        %p153 = pneg %p30
      $region30: #{fcb_forward.1} parent=27 // pred_check_branch
        %155 = sbr.rel (%p153) target = $region32
      $region31: #{fcb_forward.1} parent=27 // pred_region
        %p156 = scmp.lt.s32.totalorder %s10, 1
        %s157 = scalar_select %p156, %s10, 1
        %s158 = smul.addr %s157, 2
        %s159 = smul.addr %s158, 4
        %s160 = scalar_lea.vmem %s0, %s159
      $region32: #{fcb_forward.1} parent=27 // pred_fallthru
        _
    $region28: #{fcb_forward.1} parent=5 // pred_fallthru
      _
    %p161 = scmp.le.s32.totalorder 1, %s10
    %p162 = scmp.lt.s32.totalorder %s10, 3
    %p163 = pnand %p161, %p162
    %p164 = pneg %p163
    // Predicated region
    $region33: #{fcb_forward.1} parent=5 // pred_check
      _
    $region34: #{fcb_forward.1} parent=5 // pred_check_branch
      %166 = sbr.rel (%p163) target = $region36
    $region35: #{fcb_forward.1} parent=5 // pred_region
      %s167 = ssub.s32 %s10, 1
      %p168 = scmp.lt.s32.totalorder %s15, 1
      %s169 = scalar_select %p168, %s15, 1
      %s170 = smul.addr %s169, 2
      %s171 = smul.addr %s170, 4
      %s172 = scalar_lea.vmem %s0, %s171
      %p173 = pneg %p36
      %p174 = pneg %p33
      %p175 = pneg %p57
      %p176 = pneg %p54
      %p177 = pneg %p78
      %p178 = pneg %p75
      %p179 = pneg %p99
      %p180 = pneg %p96
      %p181 = pneg %p125
      %p182 = pneg %p122
      %p183 = scmp.lt.s32.totalorder %s15, 1
      %s184 = scalar_select %p183, %s15, 1
      %s185 = smul.addr %s184, 2
      %s186 = smul.addr %s185, 8
      %s187 = scalar_lea.vmem %s4, %s186
      %p188 = scmp.lt.s32.totalorder %s15, 1
      %s189 = scalar_select %p188, %s15, 1
      %s190 = smul.addr %s189, 2
      %s191 = smul.addr %s190, 4
      %s192 = scalar_lea.vmem %s0, %s191
      %p193 = scmp.lt.s32.totalorder %s15, 1
      %s194 = scalar_select %p193, %s15, 1
      %s195 = smul.addr %s194, 2
      %s196 = smul.addr %s195, 8
      %s197 = scalar_lea.vmem %s4, %s196
      %v198 = vld [vmem:[%s1] sm:$0x3]
      %v199 = vlaneseq
      %v200 = vshrl.u32 %v199, 7
      %v201 = vsub.s32 0, %v200
      %v202 = vrot.slane %v198, %v201
      %v203 = vlaneseq
      %v204 = vshrl.u32 %v203, 7
      %v205 = vsub.s32 1, %v204
      %v206 = vrot.slane %v198, %v205
      %vm207 = vcmp.eq.s32.totalorder %v202, 15
      %vm208 = vcmp.eq.s32.totalorder %v206, 15
      %vm209 = vcmp.eq.s32.totalorder %v202, 0
      %vm210 = vcmp.eq.s32.totalorder %v206, 0
      %v211 = vlaneseq
      %v212 = vand.u32 %v211, 127
      %v213 = vadd.s32 %v212, 128
      %vm214 = vcmp.lt.s32.totalorder %v212, 16
      %vm215 = vcmp.lt.s32.totalorder %v213, 16
      %vm216 = vcmp.ge.s32.totalorder %v212, 240
      %vm217 = vcmp.ge.s32.totalorder %v213, 240
      %v218 = vld [vmem:[%s192] sm:$0xff]
      %v220 = vcombine.high %v218, %v218
      %222 = vrot.lane.b32.xlu0 %v218, 1
      %v223 = vpop.permute.xlu0 %222
      %224 = vrot.lane.b32.xlu0 %v220, 1
      %v225 = vpop.permute.xlu0 %224
      %vm226 = vcmp.lt.s32.totalorder %v212, 1
      %v227 = vsel %vm226, %v223, %v225
      %v228 = vsel %vm226, %v225, %v223
      %229 = vrot.lane.b32.xlu0 %v218, 127
      %v230 = vpop.permute.xlu0 %229
      %231 = vrot.lane.b32.xlu0 %v220, 127
      %v232 = vpop.permute.xlu0 %231
      %vm233 = vcmp.lt.s32.totalorder %v212, 127
      %v234 = vsel %vm233, %v230, %v232
      %v235 = vsel %vm233, %v232, %v230
      %v236 = vsel %vm207, %v228, %v234
      %v237 = vsel %vm208, %v227, %v235
      %v238 = vld [vmem:[%s2] sm:$0xff]
      %240 = vset.pattern.permute.xlu0 0
      %241 = vperm.xlu0 %240, %v238
      %v242 = vpop.permute.xlu0 %241
      %v244 = vlaneseq
      %v245 = vshrl.u32 %v244, 7
      %v246 = vsub.s32 0, %v245
      %v247 = vrot.slane %v228, %v246
      %v248 = vlaneseq
      %v249 = vshrl.u32 %v248, 7
      %v250 = vsub.s32 0, %v249
      %v251 = vrot.slane %v227, %v250
      %v252 = vmul.f32 %v242, %v247
      %v253 = vmul.f32 %v242, %v251
      %v254 = vadd.f32 %v252, 0.0
      %v255 = vadd.f32 %v253, 0.0
      %s256 = scalar_lea.vmem %s2, 8
      %v257 = vld [vmem:[%s256] sm:$0xff]
      %259 = vset.pattern.permute.xlu0 0
      %260 = vperm.xlu0 %259, %v257
      %v261 = vpop.permute.xlu0 %260
      %v263 = vlaneseq
      %v264 = vshrl.u32 %v263, 7
      %v265 = vsub.s32 1, %v264
      %v266 = vrot.slane %v228, %v265
      %v267 = vlaneseq
      %v268 = vshrl.u32 %v267, 7
      %v269 = vsub.s32 1, %v268
      %v270 = vrot.slane %v227, %v269
      %v271 = vmul.f32 %v261, %v266
      %v272 = vmul.f32 %v261, %v270
      %v273 = vadd.f32 %v254, %v271
      %v274 = vadd.f32 %v255, %v272
      %s275 = scalar_lea.vmem %s2, 16
      %v276 = vld [vmem:[%s275] sm:$0xff]
      %278 = vset.pattern.permute.xlu0 0
      %279 = vperm.xlu0 %278, %v276
      %v280 = vpop.permute.xlu0 %279
      %v282 = vlaneseq
      %v283 = vshrl.u32 %v282, 7
      %v284 = vsub.s32 2, %v283
      %v285 = vrot.slane %v228, %v284
      %v286 = vlaneseq
      %v287 = vshrl.u32 %v286, 7
      %v288 = vsub.s32 2, %v287
      %v289 = vrot.slane %v227, %v288
      %v290 = vmul.f32 %v280, %v285
      %v291 = vmul.f32 %v280, %v289
      %v292 = vadd.f32 %v273, %v290
      %v293 = vadd.f32 %v274, %v291
      %s294 = scalar_lea.vmem %s2, 24
      %v295 = vld [vmem:[%s294] sm:$0xff]
      %297 = vset.pattern.permute.xlu0 0
      %298 = vperm.xlu0 %297, %v295
      %v299 = vpop.permute.xlu0 %298
      %v301 = vlaneseq
      %v302 = vshrl.u32 %v301, 7
      %v303 = vsub.s32 3, %v302
      %v304 = vrot.slane %v228, %v303
      %v305 = vlaneseq
      %v306 = vshrl.u32 %v305, 7
      %v307 = vsub.s32 3, %v306
      %v308 = vrot.slane %v227, %v307
      %v309 = vmul.f32 %v299, %v304
      %v310 = vmul.f32 %v299, %v308
      %v311 = vadd.f32 %v292, %v309
      %v312 = vadd.f32 %v293, %v310
      %s313 = scalar_lea.vmem %s2, 32
      %v314 = vld [vmem:[%s313] sm:$0xff]
      %316 = vset.pattern.permute.xlu0 0
      %317 = vperm.xlu0 %316, %v314
      %v318 = vpop.permute.xlu0 %317
      %v320 = vlaneseq
      %v321 = vshrl.u32 %v320, 7
      %v322 = vsub.s32 0, %v321
      %v323 = vrot.slane %v218, %v322
      %v324 = vlaneseq
      %v325 = vshrl.u32 %v324, 7
      %v326 = vsub.s32 4, %v325
      %v327 = vrot.slane %v218, %v326
      %v330 = vlaneseq
      %v331 = vshrl.u32 %v330, 7
      %v332 = vsub.s32 0, %v331
      %v333 = vrot.slane %v323, %v332
      %v334 = vlaneseq
      %v335 = vshrl.u32 %v334, 7
      %v336 = vsub.s32 0, %v335
      %v337 = vrot.slane %v327, %v336
      %v338 = vmul.f32 %v318, %v333
      %v339 = vmul.f32 %v318, %v337
      %v340 = vadd.f32 %v311, %v338
      %v341 = vadd.f32 %v312, %v339
      %s342 = scalar_lea.vmem %s2, 40
      %v343 = vld [vmem:[%s342] sm:$0xff]
      %345 = vset.pattern.permute.xlu0 0
      %346 = vperm.xlu0 %345, %v343
      %v347 = vpop.permute.xlu0 %346
      %v349 = vlaneseq
      %v350 = vshrl.u32 %v349, 7
      %v351 = vsub.s32 1, %v350
      %v352 = vrot.slane %v218, %v351
      %v353 = vlaneseq
      %v354 = vshrl.u32 %v353, 7
      %v355 = vsub.s32 5, %v354
      %v356 = vrot.slane %v218, %v355
      %v359 = vlaneseq
      %v360 = vshrl.u32 %v359, 7
      %v361 = vsub.s32 1, %v360
      %v362 = vrot.slane %v352, %v361
      %v363 = vlaneseq
      %v364 = vshrl.u32 %v363, 7
      %v365 = vsub.s32 1, %v364
      %v366 = vrot.slane %v356, %v365
      %v367 = vmul.f32 %v347, %v362
      %v368 = vmul.f32 %v347, %v366
      %v369 = vadd.f32 %v340, %v367
      %v370 = vadd.f32 %v341, %v368
      %s371 = scalar_lea.vmem %s2, 48
      %v372 = vld [vmem:[%s371] sm:$0xff]
      %374 = vset.pattern.permute.xlu0 0
      %375 = vperm.xlu0 %374, %v372
      %v376 = vpop.permute.xlu0 %375
      %v378 = vlaneseq
      %v379 = vshrl.u32 %v378, 7
      %v380 = vsub.s32 2, %v379
      %v381 = vrot.slane %v218, %v380
      %v382 = vlaneseq
      %v383 = vshrl.u32 %v382, 7
      %v384 = vsub.s32 6, %v383
      %v385 = vrot.slane %v218, %v384
      %v388 = vlaneseq
      %v389 = vshrl.u32 %v388, 7
      %v390 = vsub.s32 2, %v389
      %v391 = vrot.slane %v381, %v390
      %v392 = vlaneseq
      %v393 = vshrl.u32 %v392, 7
      %v394 = vsub.s32 2, %v393
      %v395 = vrot.slane %v385, %v394
      %v396 = vmul.f32 %v376, %v391
      %v397 = vmul.f32 %v376, %v395
      %v398 = vadd.f32 %v369, %v396
      %v399 = vadd.f32 %v370, %v397
      %s400 = scalar_lea.vmem %s2, 56
      %v401 = vld [vmem:[%s400] sm:$0xff]
      %403 = vset.pattern.permute.xlu0 0
      %404 = vperm.xlu0 %403, %v401
      %v405 = vpop.permute.xlu0 %404
      %v407 = vlaneseq
      %v408 = vshrl.u32 %v407, 7
      %v409 = vsub.s32 3, %v408
      %v410 = vrot.slane %v218, %v409
      %v411 = vlaneseq
      %v412 = vshrl.u32 %v411, 7
      %v413 = vsub.s32 7, %v412
      %v414 = vrot.slane %v218, %v413
      %v417 = vlaneseq
      %v418 = vshrl.u32 %v417, 7
      %v419 = vsub.s32 3, %v418
      %v420 = vrot.slane %v410, %v419
      %v421 = vlaneseq
      %v422 = vshrl.u32 %v421, 7
      %v423 = vsub.s32 3, %v422
      %v424 = vrot.slane %v414, %v423
      %v425 = vmul.f32 %v405, %v420
      %v426 = vmul.f32 %v405, %v424
      %v427 = vadd.f32 %v398, %v425
      %v428 = vadd.f32 %v399, %v426
      %s429 = scalar_lea.vmem %s2, 64
      %v430 = vld [vmem:[%s429] sm:$0xff]
      %432 = vset.pattern.permute.xlu0 0
      %433 = vperm.xlu0 %432, %v430
      %v434 = vpop.permute.xlu0 %433
      %v436 = vlaneseq
      %v437 = vshrl.u32 %v436, 7
      %v438 = vsub.s32 0, %v437
      %v439 = vrot.slane %v236, %v438
      %v440 = vlaneseq
      %v441 = vshrl.u32 %v440, 7
      %v442 = vsub.s32 0, %v441
      %v443 = vrot.slane %v237, %v442
      %v444 = vmul.f32 %v434, %v439
      %v445 = vmul.f32 %v434, %v443
      %v446 = vadd.f32 %v427, %v444
      %v447 = vadd.f32 %v428, %v445
      %s448 = scalar_lea.vmem %s2, 72
      %v449 = vld [vmem:[%s448] sm:$0xff]
      %451 = vset.pattern.permute.xlu0 0
      %452 = vperm.xlu0 %451, %v449
      %v453 = vpop.permute.xlu0 %452
      %v455 = vlaneseq
      %v456 = vshrl.u32 %v455, 7
      %v457 = vsub.s32 1, %v456
      %v458 = vrot.slane %v236, %v457
      %v459 = vlaneseq
      %v460 = vshrl.u32 %v459, 7
      %v461 = vsub.s32 1, %v460
      %v462 = vrot.slane %v237, %v461
      %v463 = vmul.f32 %v453, %v458
      %v464 = vmul.f32 %v453, %v462
      %v465 = vadd.f32 %v446, %v463
      %v466 = vadd.f32 %v447, %v464
      %s467 = scalar_lea.vmem %s2, 80
      %v468 = vld [vmem:[%s467] sm:$0xff]
      %470 = vset.pattern.permute.xlu0 0
      %471 = vperm.xlu0 %470, %v468
      %v472 = vpop.permute.xlu0 %471
      %v474 = vlaneseq
      %v475 = vshrl.u32 %v474, 7
      %v476 = vsub.s32 2, %v475
      %v477 = vrot.slane %v236, %v476
      %v478 = vlaneseq
      %v479 = vshrl.u32 %v478, 7
      %v480 = vsub.s32 2, %v479
      %v481 = vrot.slane %v237, %v480
      %v482 = vmul.f32 %v472, %v477
      %v483 = vmul.f32 %v472, %v481
      %v484 = vadd.f32 %v465, %v482
      %v485 = vadd.f32 %v466, %v483
      %s486 = scalar_lea.vmem %s2, 88
      %v487 = vld [vmem:[%s486] sm:$0xff]
      %489 = vset.pattern.permute.xlu0 0
      %490 = vperm.xlu0 %489, %v487
      %v491 = vpop.permute.xlu0 %490
      %v493 = vlaneseq
      %v494 = vshrl.u32 %v493, 7
      %v495 = vsub.s32 3, %v494
      %v496 = vrot.slane %v236, %v495
      %v497 = vlaneseq
      %v498 = vshrl.u32 %v497, 7
      %v499 = vsub.s32 3, %v498
      %v500 = vrot.slane %v237, %v499
      %v501 = vmul.f32 %v491, %v496
      %v502 = vmul.f32 %v491, %v500
      %v503 = vadd.f32 %v484, %v501
      %v504 = vadd.f32 %v485, %v502
      %505 = vrot.lane.b32.xlu0 %v503, 126
      %v506 = vpop.permute.xlu0 %505
      %507 = vrot.lane.b32.xlu0 %v504, 126
      %v508 = vpop.permute.xlu0 %507
      %vm509 = vcmp.lt.s32.totalorder %v212, 126
      %v510 = vsel %vm509, %v506, %v508
      %v511 = vsel %vm509, %v508, %v506
      %v512 = vsel %vm209, %v510, %v503
      %v513 = vsel %vm210, %v511, %v504
      %514 = vrot.lane.b32.xlu0 %v512, 16
      %v515 = vpop.permute.xlu0 %514
      %516 = vrot.lane.b32.xlu0 %v513, 16
      %v517 = vpop.permute.xlu0 %516
      %v518 = vsel %vm214, %v515, %v517
      %v519 = vsel %vm214, %v517, %v515
      %520 = vrot.lane.b32.xlu0 %v512, 112
      %v521 = vpop.permute.xlu0 %520
      %522 = vrot.lane.b32.xlu0 %v513, 112
      %v523 = vpop.permute.xlu0 %522
      %vm524 = vcmp.lt.s32.totalorder %v212, 112
      %v525 = vsel %vm524, %v521, %v523
      %v526 = vsel %vm524, %v523, %v521
      %v527 = vsel %vm214, %v525, %v519
      %v528 = vsel %vm215, %v526, %v518
      %v529 = vsel %vm216, %v519, %v525
      %v530 = vsel %vm217, %v518, %v526
      %v531 = vld [vmem:[%s3] sm:$0xff]
      %533 = vset.pattern.permute.xlu0 0
      %534 = vperm.xlu0 %533, %v531
      %v535 = vpop.permute.xlu0 %534
      %v537 = vlaneseq
      %v538 = vshrl.u32 %v537, 7
      %v539 = vsub.s32 0, %v538
      %v540 = vrot.slane %v527, %v539
      %v541 = vlaneseq
      %v542 = vshrl.u32 %v541, 7
      %v543 = vsub.s32 0, %v542
      %v544 = vrot.slane %v528, %v543
      %v545 = vmul.f32 %v535, %v540
      %v546 = vmul.f32 %v535, %v544
      %v547 = vadd.f32 %v545, 0.0
      %v548 = vadd.f32 %v546, 0.0
      %s549 = scalar_lea.vmem %s3, 8
      %v550 = vld [vmem:[%s549] sm:$0xff]
      %552 = vset.pattern.permute.xlu0 0
      %553 = vperm.xlu0 %552, %v550
      %v554 = vpop.permute.xlu0 %553
      %v556 = vlaneseq
      %v557 = vshrl.u32 %v556, 7
      %v558 = vsub.s32 1, %v557
      %v559 = vrot.slane %v527, %v558
      %v560 = vlaneseq
      %v561 = vshrl.u32 %v560, 7
      %v562 = vsub.s32 1, %v561
      %v563 = vrot.slane %v528, %v562
      %v564 = vmul.f32 %v554, %v559
      %v565 = vmul.f32 %v554, %v563
      %v566 = vadd.f32 %v547, %v564
      %v567 = vadd.f32 %v548, %v565
      %s568 = scalar_lea.vmem %s3, 16
      %v569 = vld [vmem:[%s568] sm:$0xff]
      %571 = vset.pattern.permute.xlu0 0
      %572 = vperm.xlu0 %571, %v569
      %v573 = vpop.permute.xlu0 %572
      %v575 = vlaneseq
      %v576 = vshrl.u32 %v575, 7
      %v577 = vsub.s32 2, %v576
      %v578 = vrot.slane %v527, %v577
      %v579 = vlaneseq
      %v580 = vshrl.u32 %v579, 7
      %v581 = vsub.s32 2, %v580
      %v582 = vrot.slane %v528, %v581
      %v583 = vmul.f32 %v573, %v578
      %v584 = vmul.f32 %v573, %v582
      %v585 = vadd.f32 %v566, %v583
      %v586 = vadd.f32 %v567, %v584
      %s587 = scalar_lea.vmem %s3, 24
      %v588 = vld [vmem:[%s587] sm:$0xff]
      %590 = vset.pattern.permute.xlu0 0
      %591 = vperm.xlu0 %590, %v588
      %v592 = vpop.permute.xlu0 %591
      %v594 = vlaneseq
      %v595 = vshrl.u32 %v594, 7
      %v596 = vsub.s32 3, %v595
      %v597 = vrot.slane %v527, %v596
      %v598 = vlaneseq
      %v599 = vshrl.u32 %v598, 7
      %v600 = vsub.s32 3, %v599
      %v601 = vrot.slane %v528, %v600
      %v602 = vmul.f32 %v592, %v597
      %v603 = vmul.f32 %v592, %v601
      %v604 = vadd.f32 %v585, %v602
      %v605 = vadd.f32 %v586, %v603
      %s606 = scalar_lea.vmem %s3, 32
      %v607 = vld [vmem:[%s606] sm:$0xff]
      %609 = vset.pattern.permute.xlu0 0
      %610 = vperm.xlu0 %609, %v607
      %v611 = vpop.permute.xlu0 %610
      %v613 = vlaneseq
      %v614 = vshrl.u32 %v613, 7
      %v615 = vsub.s32 4, %v614
      %v616 = vrot.slane %v527, %v615
      %v617 = vlaneseq
      %v618 = vshrl.u32 %v617, 7
      %v619 = vsub.s32 4, %v618
      %v620 = vrot.slane %v528, %v619
      %v621 = vmul.f32 %v611, %v616
      %v622 = vmul.f32 %v611, %v620
      %v623 = vadd.f32 %v604, %v621
      %v624 = vadd.f32 %v605, %v622
      %s625 = scalar_lea.vmem %s3, 40
      %v626 = vld [vmem:[%s625] sm:$0xff]
      %628 = vset.pattern.permute.xlu0 0
      %629 = vperm.xlu0 %628, %v626
      %v630 = vpop.permute.xlu0 %629
      %v632 = vlaneseq
      %v633 = vshrl.u32 %v632, 7
      %v634 = vsub.s32 5, %v633
      %v635 = vrot.slane %v527, %v634
      %v636 = vlaneseq
      %v637 = vshrl.u32 %v636, 7
      %v638 = vsub.s32 5, %v637
      %v639 = vrot.slane %v528, %v638
      %v640 = vmul.f32 %v630, %v635
      %v641 = vmul.f32 %v630, %v639
      %v642 = vadd.f32 %v623, %v640
      %v643 = vadd.f32 %v624, %v641
      %s644 = scalar_lea.vmem %s3, 48
      %v645 = vld [vmem:[%s644] sm:$0xff]
      %647 = vset.pattern.permute.xlu0 0
      %648 = vperm.xlu0 %647, %v645
      %v649 = vpop.permute.xlu0 %648
      %v651 = vlaneseq
      %v652 = vshrl.u32 %v651, 7
      %v653 = vsub.s32 6, %v652
      %v654 = vrot.slane %v527, %v653
      %v655 = vlaneseq
      %v656 = vshrl.u32 %v655, 7
      %v657 = vsub.s32 6, %v656
      %v658 = vrot.slane %v528, %v657
      %v659 = vmul.f32 %v649, %v654
      %v660 = vmul.f32 %v649, %v658
      %v661 = vadd.f32 %v642, %v659
      %v662 = vadd.f32 %v643, %v660
      %s663 = scalar_lea.vmem %s3, 56
      %v664 = vld [vmem:[%s663] sm:$0xff]
      %666 = vset.pattern.permute.xlu0 0
      %667 = vperm.xlu0 %666, %v664
      %v668 = vpop.permute.xlu0 %667
      %v670 = vlaneseq
      %v671 = vshrl.u32 %v670, 7
      %v672 = vsub.s32 7, %v671
      %v673 = vrot.slane %v527, %v672
      %v674 = vlaneseq
      %v675 = vshrl.u32 %v674, 7
      %v676 = vsub.s32 7, %v675
      %v677 = vrot.slane %v528, %v676
      %v678 = vmul.f32 %v668, %v673
      %v679 = vmul.f32 %v668, %v677
      %v680 = vadd.f32 %v661, %v678
      %v681 = vadd.f32 %v662, %v679
      %s682 = scalar_lea.vmem %s3, 64
      %v683 = vld [vmem:[%s682] sm:$0xff]
      %685 = vset.pattern.permute.xlu0 0
      %686 = vperm.xlu0 %685, %v683
      %v687 = vpop.permute.xlu0 %686
      %v689 = vlaneseq
      %v690 = vshrl.u32 %v689, 7
      %v691 = vsub.s32 0, %v690
      %v692 = vrot.slane %v512, %v691
      %v693 = vlaneseq
      %v694 = vshrl.u32 %v693, 7
      %v695 = vsub.s32 0, %v694
      %v696 = vrot.slane %v513, %v695
      %v697 = vmul.f32 %v687, %v692
      %v698 = vmul.f32 %v687, %v696
      %v699 = vadd.f32 %v680, %v697
      %v700 = vadd.f32 %v681, %v698
      %s701 = scalar_lea.vmem %s3, 72
      %v702 = vld [vmem:[%s701] sm:$0xff]
      %704 = vset.pattern.permute.xlu0 0
      %705 = vperm.xlu0 %704, %v702
      %v706 = vpop.permute.xlu0 %705
      %v708 = vlaneseq
      %v709 = vshrl.u32 %v708, 7
      %v710 = vsub.s32 1, %v709
      %v711 = vrot.slane %v512, %v710
      %v712 = vlaneseq
      %v713 = vshrl.u32 %v712, 7
      %v714 = vsub.s32 1, %v713
      %v715 = vrot.slane %v513, %v714
      %v716 = vmul.f32 %v706, %v711
      %v717 = vmul.f32 %v706, %v715
      %v718 = vadd.f32 %v699, %v716
      %v719 = vadd.f32 %v700, %v717
      %s720 = scalar_lea.vmem %s3, 80
      %v721 = vld [vmem:[%s720] sm:$0xff]
      %723 = vset.pattern.permute.xlu0 0
      %724 = vperm.xlu0 %723, %v721
      %v725 = vpop.permute.xlu0 %724
      %v727 = vlaneseq
      %v728 = vshrl.u32 %v727, 7
      %v729 = vsub.s32 2, %v728
      %v730 = vrot.slane %v512, %v729
      %v731 = vlaneseq
      %v732 = vshrl.u32 %v731, 7
      %v733 = vsub.s32 2, %v732
      %v734 = vrot.slane %v513, %v733
      %v735 = vmul.f32 %v725, %v730
      %v736 = vmul.f32 %v725, %v734
      %v737 = vadd.f32 %v718, %v735
      %v738 = vadd.f32 %v719, %v736
      %s739 = scalar_lea.vmem %s3, 88
      %v740 = vld [vmem:[%s739] sm:$0xff]
      %742 = vset.pattern.permute.xlu0 0
      %743 = vperm.xlu0 %742, %v740
      %v744 = vpop.permute.xlu0 %743
      %v746 = vlaneseq
      %v747 = vshrl.u32 %v746, 7
      %v748 = vsub.s32 3, %v747
      %v749 = vrot.slane %v512, %v748
      %v750 = vlaneseq
      %v751 = vshrl.u32 %v750, 7
      %v752 = vsub.s32 3, %v751
      %v753 = vrot.slane %v513, %v752
      %v754 = vmul.f32 %v744, %v749
      %v755 = vmul.f32 %v744, %v753
      %v756 = vadd.f32 %v737, %v754
      %v757 = vadd.f32 %v738, %v755
      %s758 = scalar_lea.vmem %s3, 96
      %v759 = vld [vmem:[%s758] sm:$0xff]
      %761 = vset.pattern.permute.xlu0 0
      %762 = vperm.xlu0 %761, %v759
      %v763 = vpop.permute.xlu0 %762
      %v765 = vlaneseq
      %v766 = vshrl.u32 %v765, 7
      %v767 = vsub.s32 4, %v766
      %v768 = vrot.slane %v512, %v767
      %v769 = vlaneseq
      %v770 = vshrl.u32 %v769, 7
      %v771 = vsub.s32 4, %v770
      %v772 = vrot.slane %v513, %v771
      %v773 = vmul.f32 %v763, %v768
      %v774 = vmul.f32 %v763, %v772
      %v775 = vadd.f32 %v756, %v773
      %v776 = vadd.f32 %v757, %v774
      %s777 = scalar_lea.vmem %s3, 104
      %v778 = vld [vmem:[%s777] sm:$0xff]
      %780 = vset.pattern.permute.xlu0 0
      %781 = vperm.xlu0 %780, %v778
      %v782 = vpop.permute.xlu0 %781
      %v784 = vlaneseq
      %v785 = vshrl.u32 %v784, 7
      %v786 = vsub.s32 5, %v785
      %v787 = vrot.slane %v512, %v786
      %v788 = vlaneseq
      %v789 = vshrl.u32 %v788, 7
      %v790 = vsub.s32 5, %v789
      %v791 = vrot.slane %v513, %v790
      %v792 = vmul.f32 %v782, %v787
      %v793 = vmul.f32 %v782, %v791
      %v794 = vadd.f32 %v775, %v792
      %v795 = vadd.f32 %v776, %v793
      %s796 = scalar_lea.vmem %s3, 112
      %v797 = vld [vmem:[%s796] sm:$0xff]
      %799 = vset.pattern.permute.xlu0 0
      %800 = vperm.xlu0 %799, %v797
      %v801 = vpop.permute.xlu0 %800
      %v803 = vlaneseq
      %v804 = vshrl.u32 %v803, 7
      %v805 = vsub.s32 6, %v804
      %v806 = vrot.slane %v512, %v805
      %v807 = vlaneseq
      %v808 = vshrl.u32 %v807, 7
      %v809 = vsub.s32 6, %v808
      %v810 = vrot.slane %v513, %v809
      %v811 = vmul.f32 %v801, %v806
      %v812 = vmul.f32 %v801, %v810
      %v813 = vadd.f32 %v794, %v811
      %v814 = vadd.f32 %v795, %v812
      %s815 = scalar_lea.vmem %s3, 120
      %v816 = vld [vmem:[%s815] sm:$0xff]
      %818 = vset.pattern.permute.xlu0 0
      %819 = vperm.xlu0 %818, %v816
      %v820 = vpop.permute.xlu0 %819
      %v822 = vlaneseq
      %v823 = vshrl.u32 %v822, 7
      %v824 = vsub.s32 7, %v823
      %v825 = vrot.slane %v512, %v824
      %v826 = vlaneseq
      %v827 = vshrl.u32 %v826, 7
      %v828 = vsub.s32 7, %v827
      %v829 = vrot.slane %v513, %v828
      %v830 = vmul.f32 %v820, %v825
      %v831 = vmul.f32 %v820, %v829
      %v832 = vadd.f32 %v813, %v830
      %v833 = vadd.f32 %v814, %v831
      %s834 = scalar_lea.vmem %s3, 128
      %v835 = vld [vmem:[%s834] sm:$0xff]
      %837 = vset.pattern.permute.xlu0 0
      %838 = vperm.xlu0 %837, %v835
      %v839 = vpop.permute.xlu0 %838
      %v841 = vlaneseq
      %v842 = vshrl.u32 %v841, 7
      %v843 = vsub.s32 0, %v842
      %v844 = vrot.slane %v529, %v843
      %v845 = vlaneseq
      %v846 = vshrl.u32 %v845, 7
      %v847 = vsub.s32 0, %v846
      %v848 = vrot.slane %v530, %v847
      %v849 = vmul.f32 %v839, %v844
      %v850 = vmul.f32 %v839, %v848
      %v851 = vadd.f32 %v832, %v849
      %v852 = vadd.f32 %v833, %v850
      %s853 = scalar_lea.vmem %s3, 136
      %v854 = vld [vmem:[%s853] sm:$0xff]
      %856 = vset.pattern.permute.xlu0 0
      %857 = vperm.xlu0 %856, %v854
      %v858 = vpop.permute.xlu0 %857
      %v860 = vlaneseq
      %v861 = vshrl.u32 %v860, 7
      %v862 = vsub.s32 1, %v861
      %v863 = vrot.slane %v529, %v862
      %v864 = vlaneseq
      %v865 = vshrl.u32 %v864, 7
      %v866 = vsub.s32 1, %v865
      %v867 = vrot.slane %v530, %v866
      %v868 = vmul.f32 %v858, %v863
      %v869 = vmul.f32 %v858, %v867
      %v870 = vadd.f32 %v851, %v868
      %v871 = vadd.f32 %v852, %v869
      %s872 = scalar_lea.vmem %s3, 144
      %v873 = vld [vmem:[%s872] sm:$0xff]
      %875 = vset.pattern.permute.xlu0 0
      %876 = vperm.xlu0 %875, %v873
      %v877 = vpop.permute.xlu0 %876
      %v879 = vlaneseq
      %v880 = vshrl.u32 %v879, 7
      %v881 = vsub.s32 2, %v880
      %v882 = vrot.slane %v529, %v881
      %v883 = vlaneseq
      %v884 = vshrl.u32 %v883, 7
      %v885 = vsub.s32 2, %v884
      %v886 = vrot.slane %v530, %v885
      %v887 = vmul.f32 %v877, %v882
      %v888 = vmul.f32 %v877, %v886
      %v889 = vadd.f32 %v870, %v887
      %v890 = vadd.f32 %v871, %v888
      %s891 = scalar_lea.vmem %s3, 152
      %v892 = vld [vmem:[%s891] sm:$0xff]
      %894 = vset.pattern.permute.xlu0 0
      %895 = vperm.xlu0 %894, %v892
      %v896 = vpop.permute.xlu0 %895
      %v898 = vlaneseq
      %v899 = vshrl.u32 %v898, 7
      %v900 = vsub.s32 3, %v899
      %v901 = vrot.slane %v529, %v900
      %v902 = vlaneseq
      %v903 = vshrl.u32 %v902, 7
      %v904 = vsub.s32 3, %v903
      %v905 = vrot.slane %v530, %v904
      %v906 = vmul.f32 %v896, %v901
      %v907 = vmul.f32 %v896, %v905
      %v908 = vadd.f32 %v889, %v906
      %v909 = vadd.f32 %v890, %v907
      %s910 = scalar_lea.vmem %s3, 160
      %v911 = vld [vmem:[%s910] sm:$0xff]
      %913 = vset.pattern.permute.xlu0 0
      %914 = vperm.xlu0 %913, %v911
      %v915 = vpop.permute.xlu0 %914
      %v917 = vlaneseq
      %v918 = vshrl.u32 %v917, 7
      %v919 = vsub.s32 4, %v918
      %v920 = vrot.slane %v529, %v919
      %v921 = vlaneseq
      %v922 = vshrl.u32 %v921, 7
      %v923 = vsub.s32 4, %v922
      %v924 = vrot.slane %v530, %v923
      %v925 = vmul.f32 %v915, %v920
      %v926 = vmul.f32 %v915, %v924
      %v927 = vadd.f32 %v908, %v925
      %v928 = vadd.f32 %v909, %v926
      %s929 = scalar_lea.vmem %s3, 168
      %v930 = vld [vmem:[%s929] sm:$0xff]
      %932 = vset.pattern.permute.xlu0 0
      %933 = vperm.xlu0 %932, %v930
      %v934 = vpop.permute.xlu0 %933
      %v936 = vlaneseq
      %v937 = vshrl.u32 %v936, 7
      %v938 = vsub.s32 5, %v937
      %v939 = vrot.slane %v529, %v938
      %v940 = vlaneseq
      %v941 = vshrl.u32 %v940, 7
      %v942 = vsub.s32 5, %v941
      %v943 = vrot.slane %v530, %v942
      %v944 = vmul.f32 %v934, %v939
      %v945 = vmul.f32 %v934, %v943
      %v946 = vadd.f32 %v927, %v944
      %v947 = vadd.f32 %v928, %v945
      %s948 = scalar_lea.vmem %s3, 176
      %v949 = vld [vmem:[%s948] sm:$0xff]
      %951 = vset.pattern.permute.xlu0 0
      %952 = vperm.xlu0 %951, %v949
      %v953 = vpop.permute.xlu0 %952
      %v955 = vlaneseq
      %v956 = vshrl.u32 %v955, 7
      %v957 = vsub.s32 6, %v956
      %v958 = vrot.slane %v529, %v957
      %v959 = vlaneseq
      %v960 = vshrl.u32 %v959, 7
      %v961 = vsub.s32 6, %v960
      %v962 = vrot.slane %v530, %v961
      %v963 = vmul.f32 %v953, %v958
      %v964 = vmul.f32 %v953, %v962
      %v965 = vadd.f32 %v946, %v963
      %v966 = vadd.f32 %v947, %v964
      %s967 = scalar_lea.vmem %s3, 184
      %v968 = vld [vmem:[%s967] sm:$0xff]
      %970 = vset.pattern.permute.xlu0 0
      %971 = vperm.xlu0 %970, %v968
      %v972 = vpop.permute.xlu0 %971
      %v974 = vlaneseq
      %v975 = vshrl.u32 %v974, 7
      %v976 = vsub.s32 7, %v975
      %v977 = vrot.slane %v529, %v976
      %v978 = vlaneseq
      %v979 = vshrl.u32 %v978, 7
      %v980 = vsub.s32 7, %v979
      %v981 = vrot.slane %v530, %v980
      %v982 = vmul.f32 %v972, %v977
      %v983 = vmul.f32 %v972, %v981
      %v984 = vadd.f32 %v965, %v982
      %v985 = vadd.f32 %v966, %v983
      %v986 = vmax.f32 %v984, 0.0
      %v987 = vmax.f32 %v985, 0.0
      %988 = vst [vmem:[%s197] sm:$0xff] %v986
      %989 = vst [vmem:[%s197 + $0x8] sm:$0xff] %v987
      %p990 = scmp.lt.s32.totalorder %s15, 1
      %s991 = scalar_select %p990, %s15, 1
      %s992 = smul.addr %s991, 2
      %s993 = smul.addr %s992, 8
      %s994 = scalar_lea.vmem %s4, %s993
      // Predicated region
      $region37: #{fcb_forward.1} parent=35 // pred_check
        %p995 = pneg %p122
      $region38: #{fcb_forward.1} parent=35 // pred_check_branch
        %997 = sbr.rel (%p995) target = $region40
      $region39: #{fcb_forward.1} parent=35 // pred_region
        _
      $region40: #{fcb_forward.1} parent=35 // pred_fallthru
        _
    $region36: #{fcb_forward.1} parent=5 // pred_fallthru
      _
    %p998 = scmp.le.s32.totalorder 2, %s10
    // Predicated region
    $region41: #{fcb_forward.1} parent=5 // pred_check
      %p999 = pneg %p998
    $region42: #{fcb_forward.1} parent=5 // pred_check_branch
      %1001 = sbr.rel (%p999) target = $region44
    $region43: #{fcb_forward.1} parent=5 // pred_region
      %s1002 = ssub.s32 %s10, 2
      // Predicated region
      $region45: #{fcb_forward.1} parent=43 // pred_check
        %p1003 = pneg %p128
      $region46: #{fcb_forward.1} parent=43 // pred_check_branch
        %1005 = sbr.rel (%p1003) target = $region48
      $region47: #{fcb_forward.1} parent=43 // pred_region
        %p1006 = scmp.lt.s32.totalorder %s16, 1
        %s1007 = scalar_select %p1006, %s16, 1
        %s1008 = smul.addr %s1007, 2
        %s1009 = smul.addr %s1008, 8
        %s1010 = scalar_lea.vmem %s4, %s1009
      $region48: #{fcb_forward.1} parent=43 // pred_fallthru
        _
    $region44: #{fcb_forward.1} parent=5 // pred_fallthru
      _
  $region6: #{fcb_forward.1} parent=0 // loop_footer
    %s14 = sadd.s32 1, %s10
  $region7: #{fcb_forward.1} parent=0 // loop_footer_branch
    %9 = sbr.rel target = $region3
  $region8: #{fcb_forward.1} parent=0 // loop_exit
    _

</llo_original>
